<compile_context>
chip_gen: v7x
topology: tpu7x:2x2x1
jax: 0.10.0
libtpu: 0.0.40
codegen_flags: <defaults>
</compile_context>

<pallas_src>
import jax
import jax.numpy as jnp
from jax.experimental import pallas as pl
from jax.experimental.pallas import tpu as pltpu

# Fixed, non-learnable 3x3 kernel (same for every channel) - baked in as constants.
_KERNEL = [
    [-0.125, -0.125, -0.125],
    [-0.125,  1.0,   -0.125],
    [-0.125, -0.125, -0.125],
]


def _round_up(a, b):
    return -(-a // b) * b


def _make_depthwise3x3_kernel(H, W, chunk, n_chunks):
    """Kernel factory: processes a (n_chunks*chunk, H, W) block, `chunk` images at a time."""

    def kernel(x_ref, o_ref, xpad_ref):
        # x_ref, o_ref : (n_chunks*chunk, H, W) input/output blocks in VMEM
        # xpad_ref     : (chunk, H+2, W+2) f32 scratch; only its 1-wide halo must be zero.

        # Zero ONLY the halo (rows 0 / H+1, cols 0 / W+1).  The interior is fully
        # overwritten by every chunk, and the halo is re-zeroed every grid step so no
        # state is carried across steps (safe under megacore 'parallel' partitioning).
        zrow = jnp.zeros((chunk, 1, W + 2), dtype=jnp.float32)
        zcol = jnp.zeros((chunk, H + 2, 1), dtype=jnp.float32)
        xpad_ref[:, 0:1, :] = zrow
        xpad_ref[:, H + 1:H + 2, :] = zrow
        xpad_ref[:, :, 0:1] = zcol
        xpad_ref[:, :, W + 1:W + 2] = zcol

        # Statically unrolled chunk loop: n_chunks is small & static, so every slice
        # offset below is a compile-time constant and the scheduler sees the whole body.
        for c in range(n_chunks):
            lo = c * chunk
            hi = lo + chunk

            # Place the chunk inside the zero frame (single interior store).
            xpad_ref[:, 1:H + 1, 1:W + 1] = x_ref[lo:hi, :, :].astype(jnp.float32)

            # Separable decomposition of the stencil: out = 1.125*x - 0.125*box3x3(x).
            # Vertical 3-tap sum over the full padded width (keeps the left/right halo):
            r = (xpad_ref[:, 0:H, :]
                 + xpad_ref[:, 1:H + 1, :]
                 + xpad_ref[:, 2:H + 2, :])                             # (chunk, H, W+2)
            # Horizontal 3-tap sum via register-level shifts of r (no extra VMEM loads):
            box = r[:, :, 0:W] + r[:, :, 1:W + 1] + r[:, :, 2:W + 2]     # (chunk, H, W)

            center = xpad_ref[:, 1:H + 1, 1:W + 1]
            o_ref[lo:hi, :, :] = (1.125 * center - 0.125 * box).astype(o_ref.dtype)

    return kernel


def custom_conv2d(x):
    """Equivalent of F.conv2d(x, fixed 3x3 kernel, padding=1, groups=C).

    x: (N, C, H, W) float32  ->  (N, C, H, W) float32
    """
    N, C, H, W = x.shape
    NC = N * C
    xr = x.reshape(NC, H, W)   # free reshape: merges leading dims only, no data movement
    itemsize = jnp.dtype(x.dtype).itemsize

    # ---------------- tiling choices ----------------
    # Per-image VMEM footprints after (8,128) tile padding.
    img_bytes = _round_up(H, 8) * _round_up(W, 128) * itemsize
    pad_img_bytes = _round_up(H + 2, 8) * _round_up(W + 2, 128) * 4     # f32 scratch

    # Images per inner chunk (scratch working set).  Capped at 16 (vreg pressure on the
    # in-register row-sum) and at NC//2 so the grid can always have >= 2 steps.
    chunk = max(1, min(16, NC // 2 if NC >= 2 else 1))
    scratch_cap = 2 * 1024 * 1024
    while chunk > 1 and chunk * pad_img_bytes > scratch_cap:
        chunk = max(1, chunk // 2)

    # Images per grid step: ~4 MiB per (double-buffered) block, a multiple of `chunk`.
    budget = 4 * 1024 * 1024
    bnc = max(chunk, (max(chunk, budget // img_bytes) // chunk) * chunk)
    if NC >= 2 * chunk:
        # Guarantee >= 2 grid steps: megacore sharding on v7x + DMA/compute pipelining.
        half = max(chunk, ((NC // 2) // chunk) * chunk)
        bnc = min(bnc, half)
    n_chunks = bnc // chunk

    # No divisibility requirement: partial tail block is masked by Pallas on writeback.
    grid = (pl.cdiv(NC, bnc),)

    # VMEM limit from actual usage: double-buffered in + out blocks + scratch + slack.
    block_bytes = bnc * img_bytes
    scratch_bytes = chunk * pad_img_bytes
    need = 2 * 2 * block_bytes + scratch_bytes
    vmem_limit = max(int(need * 1.25) + (2 << 20), 16 << 20)

    kernel = _make_depthwise3x3_kernel(H, W, chunk, n_chunks)
    out = pl.pallas_call(
        kernel,
        out_shape=jax.ShapeDtypeStruct((NC, H, W), x.dtype),
        grid=grid,
        in_specs=[pl.BlockSpec((bnc, H, W), lambda i: (i, 0, 0))],
        out_specs=pl.BlockSpec((bnc, H, W), lambda i: (i, 0, 0)),
        scratch_shapes=[pltpu.VMEM((chunk, H + 2, W + 2), jnp.float32)],
        compiler_params=pltpu.CompilerParams(
            dimension_semantics=("parallel",),
            vmem_limit_bytes=int(vmem_limit),
        ),
    )(xr)
    return out.reshape(N, C, H, W)


def _reference(x):
    # Pure-JAX reference: same stencil via explicit zero padding (matches F.conv2d).
    N, C, H, W = x.shape
    xpad = jnp.pad(x, ((0, 0), (0, 0), (1, 1), (1, 1)))
    acc = jnp.zeros_like(x)
    for di in range(3):
        for dj in range(3):
            acc = acc + _KERNEL[di][dj] * xpad[:, :, di:di + H, dj:dj + W]
    return acc


if __name__ == "__main__":
    key = jax.random.PRNGKey(0)
    N, C, H, W = 2, 4, 16, 16
    x = jax.random.normal(key, (N, C, H, W), dtype=jnp.float32)

    y = jax.block_until_ready(custom_conv2d(x))

    y_ref = _reference(x)
    assert y.shape == (N, C, H, W)
    err = float(jnp.max(jnp.abs(y - y_ref)))
    assert jnp.allclose(y, y_ref, atol=1e-5, rtol=1e-5), err

    print("KERNEL_OK")
</pallas_src>

<mosaic_0001>
module attributes {stable_mosaic.version = 11 : i64} {
  func.func @kernel(%arg0: i32, %arg1: memref<4x16x16xf32, #tpu.memory_space<vmem>>, %arg2: memref<4x16x16xf32, #tpu.memory_space<vmem>>, %arg3: memref<4x18x18xf32, #tpu.memory_space<vmem>>) attributes {dimension_semantics = [#tpu.dimension_semantics<parallel>], iteration_bounds = array<i64: 2>, scalar_prefetch = 0 : i64, scratch_operands = 1 : i64, tpu.core_type = #tpu.core_type<tc>, window_params = [{transform_indices = @transform_0, window_bounds = array<i64: 4, 16, 16>}, {transform_indices = @transform_1, window_bounds = array<i64: 4, 16, 16>}]} {
    %cst = arith.constant 0.000000e+00 : f32
    %0 = vector.broadcast %cst : f32 to vector<4x1x18xf32>
    %cst_0 = arith.constant 0.000000e+00 : f32
    %1 = vector.broadcast %cst_0 : f32 to vector<4x18x1xf32>
    %c0 = arith.constant 0 : index
    %c0_1 = arith.constant 0 : index
    %c0_2 = arith.constant 0 : index
    %2 = vector.load %arg3[%c0, %c0_1, %c0_2] : memref<4x18x18xf32, #tpu.memory_space<vmem>>, vector<4x1x18xf32>
    tpu.vector_store %arg3[%c0, %c0_1, %c0_2], %0 {strides = array<i32>} : memref<4x18x18xf32, #tpu.memory_space<vmem>>, vector<4x1x18xf32>,
    %c0_3 = arith.constant 0 : index
    %c17 = arith.constant 17 : index
    %c0_4 = arith.constant 0 : index
    %3 = vector.load %arg3[%c0_3, %c17, %c0_4] : memref<4x18x18xf32, #tpu.memory_space<vmem>>, vector<4x1x18xf32>
    tpu.vector_store %arg3[%c0_3, %c17, %c0_4], %0 {strides = array<i32>} : memref<4x18x18xf32, #tpu.memory_space<vmem>>, vector<4x1x18xf32>,
    %c0_5 = arith.constant 0 : index
    %c0_6 = arith.constant 0 : index
    %c0_7 = arith.constant 0 : index
    %4 = vector.load %arg3[%c0_5, %c0_6, %c0_7] : memref<4x18x18xf32, #tpu.memory_space<vmem>>, vector<4x18x1xf32>
    tpu.vector_store %arg3[%c0_5, %c0_6, %c0_7], %1 {strides = array<i32>} : memref<4x18x18xf32, #tpu.memory_space<vmem>>, vector<4x18x1xf32>,
    %c0_8 = arith.constant 0 : index
    %c0_9 = arith.constant 0 : index
    %c17_10 = arith.constant 17 : index
    %5 = vector.load %arg3[%c0_8, %c0_9, %c17_10] : memref<4x18x18xf32, #tpu.memory_space<vmem>>, vector<4x18x1xf32>
    tpu.vector_store %arg3[%c0_8, %c0_9, %c17_10], %1 {strides = array<i32>} : memref<4x18x18xf32, #tpu.memory_space<vmem>>, vector<4x18x1xf32>,
    %c0_11 = arith.constant 0 : index
    %c0_12 = arith.constant 0 : index
    %c0_13 = arith.constant 0 : index
    %6 = vector.load %arg1[%c0_11, %c0_12, %c0_13] : memref<4x16x16xf32, #tpu.memory_space<vmem>>, vector<4x16x16xf32>
    %c0_14 = arith.constant 0 : index
    %c1 = arith.constant 1 : index
    %c1_15 = arith.constant 1 : index
    %7 = vector.load %arg3[%c0_14, %c1, %c1_15] : memref<4x18x18xf32, #tpu.memory_space<vmem>>, vector<4x16x16xf32>
    tpu.vector_store %arg3[%c0_14, %c1, %c1_15], %6 {strides = array<i32>} : memref<4x18x18xf32, #tpu.memory_space<vmem>>, vector<4x16x16xf32>,
    %c0_16 = arith.constant 0 : index
    %c0_17 = arith.constant 0 : index
    %c0_18 = arith.constant 0 : index
    %8 = vector.load %arg3[%c0_16, %c0_17, %c0_18] : memref<4x18x18xf32, #tpu.memory_space<vmem>>, vector<4x16x18xf32>
    %c0_19 = arith.constant 0 : index
    %c1_20 = arith.constant 1 : index
    %c0_21 = arith.constant 0 : index
    %9 = vector.load %arg3[%c0_19, %c1_20, %c0_21] : memref<4x18x18xf32, #tpu.memory_space<vmem>>, vector<4x16x18xf32>
    %10 = arith.addf %8, %9 : vector<4x16x18xf32>
    %c0_22 = arith.constant 0 : index
    %c2 = arith.constant 2 : index
    %c0_23 = arith.constant 0 : index
    %11 = vector.load %arg3[%c0_22, %c2, %c0_23] : memref<4x18x18xf32, #tpu.memory_space<vmem>>, vector<4x16x18xf32>
    %12 = arith.addf %10, %11 : vector<4x16x18xf32>
    %13 = vector.extract_strided_slice %12 {offsets = [0, 0, 0], sizes = [4, 16, 16], strides = [1, 1, 1]} : vector<4x16x18xf32> to vector<4x16x16xf32>
    %14 = vector.extract_strided_slice %12 {offsets = [0, 0, 1], sizes = [4, 16, 16], strides = [1, 1, 1]} : vector<4x16x18xf32> to vector<4x16x16xf32>
    %15 = arith.addf %13, %14 : vector<4x16x16xf32>
    %16 = vector.extract_strided_slice %12 {offsets = [0, 0, 2], sizes = [4, 16, 16], strides = [1, 1, 1]} : vector<4x16x18xf32> to vector<4x16x16xf32>
    %17 = arith.addf %15, %16 : vector<4x16x16xf32>
    %c0_24 = arith.constant 0 : index
    %c1_25 = arith.constant 1 : index
    %c1_26 = arith.constant 1 : index
    %18 = vector.load %arg3[%c0_24, %c1_25, %c1_26] : memref<4x18x18xf32, #tpu.memory_space<vmem>>, vector<4x16x16xf32>
    %cst_27 = arith.constant 1.125000e+00 : f32
    %19 = vector.broadcast %cst_27 : f32 to vector<4x16x16xf32>
    %20 = arith.mulf %19, %18 : vector<4x16x16xf32>
    %cst_28 = arith.constant 1.250000e-01 : f32
    %21 = vector.broadcast %cst_28 : f32 to vector<4x16x16xf32>
    %22 = arith.mulf %21, %17 : vector<4x16x16xf32>
    %23 = arith.subf %20, %22 : vector<4x16x16xf32>
    %c0_29 = arith.constant 0 : index
    %c0_30 = arith.constant 0 : index
    %c0_31 = arith.constant 0 : index
    %24 = vector.load %arg2[%c0_29, %c0_30, %c0_31] : memref<4x16x16xf32, #tpu.memory_space<vmem>>, vector<4x16x16xf32>
    tpu.vector_store %arg2[%c0_29, %c0_30, %c0_31], %23 {strides = array<i32>} : memref<4x16x16xf32, #tpu.memory_space<vmem>>, vector<4x16x16xf32>,
    return
  }
  func.func @transform_0(%arg0: i32) -> (i32, i32, i32) {
    %c0_i32 = arith.constant 0 : i32
    %c0_i32_0 = arith.constant 0 : i32
    %c0_i32_1 = arith.constant 0 : i32
    return %arg0, %c0_i32, %c0_i32_0 : i32, i32, i32
  }
  func.func @transform_1(%arg0: i32) -> (i32, i32, i32) {
    %c0_i32 = arith.constant 0 : i32
    %c0_i32_0 = arith.constant 0 : i32
    %c0_i32_1 = arith.constant 0 : i32
    return %arg0, %c0_i32, %c0_i32_0 : i32, i32, i32
  }
}

</mosaic_0001>

<llo_original>
// kernel: tpu_custom_call.1
$region0: #{tpu_custom_call.1}
  #allocation0 [shape = 'u32[]', space=smem, size = 0x4, offset = 0x4, fixed_abs, tag = 'smem constant byte address 0x4 - core index']
  #allocation1 [shape = 'u32[144,128]{1,0:T(1,128)}', space=vmem, size = 0x12000, scoped, tag = 'internal scratch']
  #allocation2 [shape = 'f32[4,18,18]{2,1,0:T(8,128)}', space=vmem, size = 0xc000, scoped, tag = 'scratch operand']
  %s0 = inlined_call_operand.hbm [shape: f32[8,16,16], index: 0, kind: input, shape index: {}]
  %s1 = inlined_call_operand.hbm [shape: f32[8,16,16], index: 1, kind: output, shape index: {}]
  %s2 = sld [smem:[#allocation0]]
  $region41: #{tpu_custom_call.1} parent=0
    _
  %s4 = ssub.s32 1, %s2
  %s5 = scalar_select 0, %s4, %s2
  $region1: #{tpu_custom_call.1} parent=0
    #allocation3 [shape = 'u8[65536]{0}', space=vmem, size = 0x10000, scoped, tag = 'input window, operand 0']
    #allocation4 [shape = 's32[2]{0}', space=sflag, size = 0x8, scoped, tag = 'scoped memory for tpu_custom_call.1']
    #allocation5 [shape = 's32[2]{0}', space=sflag, size = 0x8, scoped, tag = 'scoped memory for tpu_custom_call.1']
    #allocation6 [shape = 'u8[65536]{0}', space=vmem, size = 0x10000, scoped, tag = 'output window, operand 0']
    %6 = vsyncpa [#allocation4], 0
    %s7 = scalar_lea.sflag [#allocation4], 1
    %8 = vsyncpa %s7, 0
    %9 = vsyncpa [#allocation5], 0
    %s10 = scalar_lea.sflag [#allocation5], 1
    %11 = vsyncpa %s10, 0
    loop: start=0, step=1, limit=4
    $region2: #{tpu_custom_call.1} parent=1 // loop_pre_header
      _
    $region3: #{tpu_custom_call.1} parent=1 // loop_header
      %s13 = sphi 0, %s17
      %p14 = scmp.ge.s32.totalorder %s13, 4
      %s23 = sphi 0, %s25
      %s26 = sphi 0, %s23
      %s27 = sphi 0, %s26
      %s43 = sphi 0, %s27
      %s49 = sphi 0, %s51
      %s52 = sphi 0, %s49
      %s53 = sphi 0, %s52
      %s69 = sphi 0, %s53
    $region4: #{tpu_custom_call.1} parent=1 // loop_header_branch
      %16 = sbr.rel (%p14) target = $region8
    $region5: #{tpu_custom_call.1} parent=1 // loop_body
      %s18 = ssub.s32 %s13, 1
      %s19 = ssub.s32 %s13, 2
      %s20 = sadd.s32 %s13, 1
      %s21 = ssub.s32 %s13, %s20
      %p22 = scmp.eq.s32.totalorder %s21, 0
      %s24 = sadd.s32 %s23, 1
      %s25 = scalar_select %p22, %s23, %s24
      %p28 = pneg %p22
      %p29 = scmp.eq.s32.totalorder %s13, 1
      %p30 = por %p28, %p29
      %p31 = scmp.ne.s32.totalorder %s23, %s26
      %p32 = scmp.eq.s32.totalorder %s13, 0
      %p33 = por %p31, %p32
      %p34 = scmp.ne.s32.totalorder %s23, %s26
      %p35 = scmp.eq.s32.totalorder %s18, 1
      %p36 = por %p34, %p35
      %p37 = scmp.ne.s32.totalorder %s26, %s27
      %p38 = scmp.eq.s32.totalorder %s18, 0
      %p39 = por %p37, %p38
      %p40 = scmp.ne.s32.totalorder %s26, %s27
      %p41 = scmp.eq.s32.totalorder %s19, 1
      %p42 = por %p40, %p41
      %p44 = scmp.ne.s32.totalorder %s27, %s43
      %p45 = scmp.eq.s32.totalorder %s19, 0
      %p46 = por %p44, %p45
      %s47 = ssub.s32 %s13, %s20
      %p48 = scmp.eq.s32.totalorder %s47, 0
      %s50 = sadd.s32 %s49, 1
      %s51 = scalar_select %p48, %s49, %s50
      %p54 = pneg %p48
      %p55 = scmp.eq.s32.totalorder %s13, 1
      %p56 = por %p54, %p55
      %p57 = scmp.ne.s32.totalorder %s49, %s52
      %p58 = scmp.eq.s32.totalorder %s13, 0
      %p59 = por %p57, %p58
      %p60 = scmp.ne.s32.totalorder %s49, %s52
      %p61 = scmp.eq.s32.totalorder %s18, 1
      %p62 = por %p60, %p61
      %p63 = scmp.ne.s32.totalorder %s52, %s53
      %p64 = scmp.eq.s32.totalorder %s18, 0
      %p65 = por %p63, %p64
      %p66 = scmp.ne.s32.totalorder %s52, %s53
      %p67 = scmp.eq.s32.totalorder %s19, 1
      %p68 = por %p66, %p67
      %p70 = scmp.ne.s32.totalorder %s53, %s69
      %p71 = scmp.eq.s32.totalorder %s19, 0
      %p72 = por %p70, %p71
      %p73 = scmp.le.s32.totalorder 1, %s13
      %p74 = scmp.lt.s32.totalorder %s13, 3
      %p75 = pnand %p73, %p74
      %p76 = pneg %p75
      // Predicated region
      $region9: #{tpu_custom_call.1} parent=5 // pred_check
        _
      $region10: #{tpu_custom_call.1} parent=5 // pred_check_branch
        %78 = sbr.rel (%p75) target = $region12
      $region11: #{tpu_custom_call.1} parent=5 // pred_region
        %s79 = ssub.s32 %s13, 1
      $region12: #{tpu_custom_call.1} parent=5 // pred_fallthru
        _
      %p80 = scmp.lt.s32.totalorder %s13, 2
      // Predicated region
      $region13: #{tpu_custom_call.1} parent=5 // pred_check
        %p81 = pneg %p80
      $region14: #{tpu_custom_call.1} parent=5 // pred_check_branch
        %83 = sbr.rel (%p81) target = $region16
      $region15: #{tpu_custom_call.1} parent=5 // pred_region
        // Predicated region
        $region17: #{tpu_custom_call.1} parent=15 // pred_check
          %p84 = pneg %p33
        $region18: #{tpu_custom_call.1} parent=15 // pred_check_branch
          %86 = sbr.rel (%p84) target = $region20
        $region19: #{tpu_custom_call.1} parent=15 // pred_region
          %s87 = sand.u32 %s23, 1
          %s88 = scalar_lea.sflag [#allocation4], %s87
          %s89 = sand.u32 %s23, 1
          %s90 = smul.addr %s89, 64
          %s91 = scalar_lea.vmem [#allocation3], %s90
          %s92 = smul.u32 4, %s13
          %s94 = ssub.s32 1024, 1024
          %95 = vsyncadd %s88, %s94
          %s96 = smul.addr %s92, 2
          %s97 = smul.addr %s96, 128
          %s98 = scalar_lea.hbm %s0, %s97
          %s99 = sshll.u32 %s91, 4
          %s100 = int_to_ptr.vmem [resolvable:$true] %s99
          %105 = dma.hbm_to_vmem [thread:$0]  %s98, 1024, %s100, %s88, 128, 128, 8
        $region20: #{tpu_custom_call.1} parent=15 // pred_fallthru
          _
      $region16: #{tpu_custom_call.1} parent=5 // pred_fallthru
        _
      %p106 = scmp.le.s32.totalorder 1, %s13
      %p107 = scmp.lt.s32.totalorder %s13, 3
      %p108 = pnand %p106, %p107
      %p109 = pneg %p108
      // Predicated region
      $region21: #{tpu_custom_call.1} parent=5 // pred_check
        _
      $region22: #{tpu_custom_call.1} parent=5 // pred_check_branch
        %111 = sbr.rel (%p108) target = $region24
      $region23: #{tpu_custom_call.1} parent=5 // pred_region
        %s112 = ssub.s32 %s13, 1
        %s113 = sand.u32 %s26, 1
        %s114 = scalar_lea.sflag [#allocation4], %s113
        %s115 = sand.u32 %s26, 1
        %s116 = smul.addr %s115, 64
        %s117 = scalar_lea.vmem [#allocation3], %s116
        // Predicated region
        $region25: #{tpu_custom_call.1} parent=23 // pred_check
          %p118 = pneg %p39
        $region26: #{tpu_custom_call.1} parent=23 // pred_check_branch
          %120 = sbr.rel (%p118) target = $region28
        $region27: #{tpu_custom_call.1} parent=23 // pred_region
          %121 = dma.done %s114, 1024
        $region28: #{tpu_custom_call.1} parent=23 // pred_fallthru
          _
        %s122 = sand.u32 %s26, 1
        %s123 = scalar_lea.sflag [#allocation4], %s122
        %s124 = sand.u32 %s26, 1
        %s125 = smul.addr %s124, 64
        %s126 = scalar_lea.vmem [#allocation3], %s125
        %p127 = pneg %p39
        %p128 = pneg %p36
        %p129 = pneg %p65
        %p130 = pneg %p62
        %s131 = sand.u32 %s52, 1
        %s132 = scalar_lea.sflag [#allocation5], %s131
        %s133 = sand.u32 %s52, 1
        %s134 = smul.addr %s133, 64
        %s135 = scalar_lea.vmem [#allocation6], %s134
        %s136 = smul.u32 4, %s18
        %s137 = smul.u32 4, %s18
        %vm138 = vcmask 139264
        %139 = vst.msk [vmem:[#allocation2] sm:$0x1] %vm138, 0.0
        %140 = vst.msk [vmem:[#allocation2 + $0x18] sm:$0x1] %vm138, 0.0
        %141 = vst.msk [vmem:[#allocation2 + $0x30] sm:$0x1] %vm138, 0.0
        %142 = vst.msk [vmem:[#allocation2 + $0x48] sm:$0x1] %vm138, 0.0
        %143 = vst.msk [vmem:[#allocation2 + $0x11] sm:$0x1] %vm138, 0.0
        %144 = vst.msk [vmem:[#allocation2 + $0x29] sm:$0x1] %vm138, 0.0
        %145 = vst.msk [vmem:[#allocation2 + $0x41] sm:$0x1] %vm138, 0.0
        %146 = vst.msk [vmem:[#allocation2 + $0x59] sm:$0x1] %vm138, 0.0
        %vm147 = vcmask 7168
        %148 = vst.msk [vmem:[#allocation2] sm:$0xff] %vm147, 0.0
        %149 = vst.msk [vmem:[#allocation2 + $0x8] sm:$0xff] %vm147, 0.0
        %vm150 = vcmask 1024
        %151 = vst.msk [vmem:[#allocation2 + $0x10] sm:$0x3] %vm150, 0.0
        %152 = vst.msk [vmem:[#allocation2 + $0x18] sm:$0xff] %vm147, 0.0
        %153 = vst.msk [vmem:[#allocation2 + $0x20] sm:$0xff] %vm147, 0.0
        %154 = vst.msk [vmem:[#allocation2 + $0x28] sm:$0x3] %vm150, 0.0
        %155 = vst.msk [vmem:[#allocation2 + $0x30] sm:$0xff] %vm147, 0.0
        %156 = vst.msk [vmem:[#allocation2 + $0x38] sm:$0xff] %vm147, 0.0
        %157 = vst.msk [vmem:[#allocation2 + $0x40] sm:$0x3] %vm150, 0.0
        %158 = vst.msk [vmem:[#allocation2 + $0x48] sm:$0xff] %vm147, 0.0
        %159 = vst.msk [vmem:[#allocation2 + $0x50] sm:$0xff] %vm147, 0.0
        %160 = vst.msk [vmem:[#allocation2 + $0x58] sm:$0x3] %vm150, 0.0
        %vm161 = vcmask 146568
        %162 = vst.msk [vmem:[#allocation2] sm:$0xff] %vm161, 0.0
        %163 = vst.msk [vmem:[#allocation2 + $0x8] sm:$0xff] %vm161, 0.0
        %vm164 = vcmask 140424
        %165 = vst.msk [vmem:[#allocation2 + $0x10] sm:$0x3] %vm164, 0.0
        %166 = vst.msk [vmem:[#allocation2 + $0x18] sm:$0xff] %vm161, 0.0
        %167 = vst.msk [vmem:[#allocation2 + $0x20] sm:$0xff] %vm161, 0.0
        %168 = vst.msk [vmem:[#allocation2 + $0x28] sm:$0x3] %vm164, 0.0
        %169 = vst.msk [vmem:[#allocation2 + $0x30] sm:$0xff] %vm161, 0.0
        %170 = vst.msk [vmem:[#allocation2 + $0x38] sm:$0xff] %vm161, 0.0
        %171 = vst.msk [vmem:[#allocation2 + $0x40] sm:$0x3] %vm164, 0.0
        %172 = vst.msk [vmem:[#allocation2 + $0x48] sm:$0xff] %vm161, 0.0
        %173 = vst.msk [vmem:[#allocation2 + $0x50] sm:$0xff] %vm161, 0.0
        %174 = vst.msk [vmem:[#allocation2 + $0x58] sm:$0x3] %vm164, 0.0
        %v175 = vld [vmem:[%s117] sm:$0xff]
        %v176 = vld [vmem:[%s117 + $0x8] sm:$0xff]
        %v177 = vld [vmem:[%s117 + $0x10] sm:$0xff]
        %v178 = vld [vmem:[%s117 + $0x18] sm:$0xff]
        %v179 = vld [vmem:[%s117 + $0x20] sm:$0xff]
        %v180 = vld [vmem:[%s117 + $0x28] sm:$0xff]
        %v181 = vld [vmem:[%s117 + $0x30] sm:$0xff]
        %v182 = vld [vmem:[%s117 + $0x38] sm:$0xff]
        %191 = vrot.lane.b32.xlu0 %v175, 1
        %v192 = vpop.permute.xlu0 %191
        %193 = vrot.lane.b32.xlu0 %v176, 1
        %v194 = vpop.permute.xlu0 %193
        %195 = vrot.lane.b32.xlu0 %v177, 1
        %v196 = vpop.permute.xlu0 %195
        %197 = vrot.lane.b32.xlu0 %v178, 1
        %v198 = vpop.permute.xlu0 %197
        %199 = vrot.lane.b32.xlu0 %v179, 1
        %v200 = vpop.permute.xlu0 %199
        %201 = vrot.lane.b32.xlu0 %v180, 1
        %v202 = vpop.permute.xlu0 %201
        %203 = vrot.lane.b32.xlu0 %v181, 1
        %v204 = vpop.permute.xlu0 %203
        %205 = vrot.lane.b32.xlu0 %v182, 1
        %v206 = vpop.permute.xlu0 %205
        %vm215 = vcmask 138248
        %216 = vst.msk [vmem:[#allocation2 + $0x1] sm:$0xff] %vm215, %v192
        %217 = vst.msk [vmem:[#allocation2 + $0x9] sm:$0xff] %vm215, %v194
        %218 = vst.msk [vmem:[#allocation2 + $0x19] sm:$0xff] %vm215, %v196
        %219 = vst.msk [vmem:[#allocation2 + $0x21] sm:$0xff] %vm215, %v198
        %220 = vst.msk [vmem:[#allocation2 + $0x31] sm:$0xff] %vm215, %v200
        %221 = vst.msk [vmem:[#allocation2 + $0x39] sm:$0xff] %vm215, %v202
        %222 = vst.msk [vmem:[#allocation2 + $0x49] sm:$0xff] %vm215, %v204
        %223 = vst.msk [vmem:[#allocation2 + $0x51] sm:$0xff] %vm215, %v206
        %v224 = vld [vmem:[#allocation2] sm:$0xff]
        %v225 = vld [vmem:[#allocation2 + $0x8] sm:$0xff]
        %v226 = vld [vmem:[#allocation2 + $0x18] sm:$0xff]
        %v227 = vld [vmem:[#allocation2 + $0x20] sm:$0xff]
        %v228 = vld [vmem:[#allocation2 + $0x30] sm:$0xff]
        %v229 = vld [vmem:[#allocation2 + $0x38] sm:$0xff]
        %v230 = vld [vmem:[#allocation2 + $0x48] sm:$0xff]
        %v231 = vld [vmem:[#allocation2 + $0x50] sm:$0xff]
        %v232 = vld [vmem:[#allocation2 + $0x1] sm:$0xff]
        %v233 = vld [vmem:[#allocation2 + $0x9] sm:$0xff]
        %v234 = vld [vmem:[#allocation2 + $0x19] sm:$0xff]
        %v235 = vld [vmem:[#allocation2 + $0x21] sm:$0xff]
        %v236 = vld [vmem:[#allocation2 + $0x31] sm:$0xff]
        %v237 = vld [vmem:[#allocation2 + $0x39] sm:$0xff]
        %v238 = vld [vmem:[#allocation2 + $0x49] sm:$0xff]
        %v239 = vld [vmem:[#allocation2 + $0x51] sm:$0xff]
        %v240 = vadd.f32 %v224, %v232
        %v241 = vadd.f32 %v225, %v233
        %v242 = vadd.f32 %v226, %v234
        %v243 = vadd.f32 %v227, %v235
        %v244 = vadd.f32 %v228, %v236
        %v245 = vadd.f32 %v229, %v237
        %v246 = vadd.f32 %v230, %v238
        %v247 = vadd.f32 %v231, %v239
        %v248 = vld [vmem:[#allocation2 + $0x2] sm:$0xff]
        %v249 = vld [vmem:[#allocation2 + $0xa] sm:$0xff]
        %v250 = vld [vmem:[#allocation2 + $0x1a] sm:$0xff]
        %v251 = vld [vmem:[#allocation2 + $0x22] sm:$0xff]
        %v252 = vld [vmem:[#allocation2 + $0x32] sm:$0xff]
        %v253 = vld [vmem:[#allocation2 + $0x3a] sm:$0xff]
        %v254 = vld [vmem:[#allocation2 + $0x4a] sm:$0xff]
        %v255 = vld [vmem:[#allocation2 + $0x52] sm:$0xff]
        %v256 = vadd.f32 %v240, %v248
        %v257 = vadd.f32 %v241, %v249
        %v258 = vadd.f32 %v242, %v250
        %v259 = vadd.f32 %v243, %v251
        %v260 = vadd.f32 %v244, %v252
        %v261 = vadd.f32 %v245, %v253
        %v262 = vadd.f32 %v246, %v254
        %v263 = vadd.f32 %v247, %v255
        %272 = vrot.lane.b32.xlu0 %v256, 127
        %v273 = vpop.permute.xlu0 %272
        %274 = vrot.lane.b32.xlu0 %v257, 127
        %v275 = vpop.permute.xlu0 %274
        %276 = vrot.lane.b32.xlu0 %v258, 127
        %v277 = vpop.permute.xlu0 %276
        %278 = vrot.lane.b32.xlu0 %v259, 127
        %v279 = vpop.permute.xlu0 %278
        %280 = vrot.lane.b32.xlu0 %v260, 127
        %v281 = vpop.permute.xlu0 %280
        %282 = vrot.lane.b32.xlu0 %v261, 127
        %v283 = vpop.permute.xlu0 %282
        %284 = vrot.lane.b32.xlu0 %v262, 127
        %v285 = vpop.permute.xlu0 %284
        %286 = vrot.lane.b32.xlu0 %v263, 127
        %v287 = vpop.permute.xlu0 %286
        %v296 = vadd.f32 %v256, %v273
        %v297 = vadd.f32 %v257, %v275
        %v298 = vadd.f32 %v258, %v277
        %v299 = vadd.f32 %v259, %v279
        %v300 = vadd.f32 %v260, %v281
        %v301 = vadd.f32 %v261, %v283
        %v302 = vadd.f32 %v262, %v285
        %v303 = vadd.f32 %v263, %v287
        %304 = vrot.lane.b32.xlu0 %v256, 126
        %v305 = vpop.permute.xlu0 %304
        %306 = vrot.lane.b32.xlu0 %v257, 126
        %v307 = vpop.permute.xlu0 %306
        %308 = vrot.lane.b32.xlu0 %v258, 126
        %v309 = vpop.permute.xlu0 %308
        %310 = vrot.lane.b32.xlu0 %v259, 126
        %v311 = vpop.permute.xlu0 %310
        %312 = vrot.lane.b32.xlu0 %v260, 126
        %v313 = vpop.permute.xlu0 %312
        %314 = vrot.lane.b32.xlu0 %v261, 126
        %v315 = vpop.permute.xlu0 %314
        %316 = vrot.lane.b32.xlu0 %v262, 126
        %v317 = vpop.permute.xlu0 %316
        %318 = vrot.lane.b32.xlu0 %v263, 126
        %v319 = vpop.permute.xlu0 %318
        %v328 = vadd.f32 %v296, %v305
        %v329 = vadd.f32 %v297, %v307
        %v330 = vadd.f32 %v298, %v309
        %v331 = vadd.f32 %v299, %v311
        %v332 = vadd.f32 %v300, %v313
        %v333 = vadd.f32 %v301, %v315
        %v334 = vadd.f32 %v302, %v317
        %v335 = vadd.f32 %v303, %v319
        %v336 = vmul.f32 %v232, 1.125
        %v337 = vmul.f32 %v233, 1.125
        %v338 = vmul.f32 %v234, 1.125
        %v339 = vmul.f32 %v235, 1.125
        %v340 = vmul.f32 %v236, 1.125
        %v341 = vmul.f32 %v237, 1.125
        %v342 = vmul.f32 %v238, 1.125
        %v343 = vmul.f32 %v239, 1.125
        %v344 = vmul.f32 %v328, 0.125
        %v345 = vmul.f32 %v329, 0.125
        %v346 = vmul.f32 %v330, 0.125
        %v347 = vmul.f32 %v331, 0.125
        %v348 = vmul.f32 %v332, 0.125
        %v349 = vmul.f32 %v333, 0.125
        %v350 = vmul.f32 %v334, 0.125
        %v351 = vmul.f32 %v335, 0.125
        %360 = vrot.lane.b32.xlu0 %v344, 1
        %v361 = vpop.permute.xlu0 %360
        %362 = vrot.lane.b32.xlu0 %v345, 1
        %v363 = vpop.permute.xlu0 %362
        %364 = vrot.lane.b32.xlu0 %v346, 1
        %v365 = vpop.permute.xlu0 %364
        %366 = vrot.lane.b32.xlu0 %v347, 1
        %v367 = vpop.permute.xlu0 %366
        %368 = vrot.lane.b32.xlu0 %v348, 1
        %v369 = vpop.permute.xlu0 %368
        %370 = vrot.lane.b32.xlu0 %v349, 1
        %v371 = vpop.permute.xlu0 %370
        %372 = vrot.lane.b32.xlu0 %v350, 1
        %v373 = vpop.permute.xlu0 %372
        %374 = vrot.lane.b32.xlu0 %v351, 1
        %v375 = vpop.permute.xlu0 %374
        %v384 = vsub.f32 %v336, %v361
        %v385 = vsub.f32 %v337, %v363
        %v386 = vsub.f32 %v338, %v365
        %v387 = vsub.f32 %v339, %v367
        %v388 = vsub.f32 %v340, %v369
        %v389 = vsub.f32 %v341, %v371
        %v390 = vsub.f32 %v342, %v373
        %v391 = vsub.f32 %v343, %v375
        %400 = vrot.lane.b32.xlu0 %v384, 127
        %v401 = vpop.permute.xlu0 %400
        %402 = vrot.lane.b32.xlu0 %v385, 127
        %v403 = vpop.permute.xlu0 %402
        %404 = vrot.lane.b32.xlu0 %v386, 127
        %v405 = vpop.permute.xlu0 %404
        %406 = vrot.lane.b32.xlu0 %v387, 127
        %v407 = vpop.permute.xlu0 %406
        %408 = vrot.lane.b32.xlu0 %v388, 127
        %v409 = vpop.permute.xlu0 %408
        %410 = vrot.lane.b32.xlu0 %v389, 127
        %v411 = vpop.permute.xlu0 %410
        %412 = vrot.lane.b32.xlu0 %v390, 127
        %v413 = vpop.permute.xlu0 %412
        %414 = vrot.lane.b32.xlu0 %v391, 127
        %v415 = vpop.permute.xlu0 %414
        %vm424 = vcmask 130048
        %425 = vst.msk [vmem:[%s135] sm:$0xff] %vm424, %v401
        %426 = vst.msk [vmem:[%s135 + $0x8] sm:$0xff] %vm424, %v403
        %427 = vst.msk [vmem:[%s135 + $0x10] sm:$0xff] %vm424, %v405
        %428 = vst.msk [vmem:[%s135 + $0x18] sm:$0xff] %vm424, %v407
        %429 = vst.msk [vmem:[%s135 + $0x20] sm:$0xff] %vm424, %v409
        %430 = vst.msk [vmem:[%s135 + $0x28] sm:$0xff] %vm424, %v411
        %431 = vst.msk [vmem:[%s135 + $0x30] sm:$0xff] %vm424, %v413
        %432 = vst.msk [vmem:[%s135 + $0x38] sm:$0xff] %vm424, %v415
        %s433 = sand.u32 %s52, 1
        %s434 = scalar_lea.sflag [#allocation5], %s433
        %s435 = sand.u32 %s52, 1
        %s436 = smul.addr %s435, 64
        %s437 = scalar_lea.vmem [#allocation6], %s436
        // Predicated region
        $region29: #{tpu_custom_call.1} parent=23 // pred_check
          %p438 = pneg %p62
        $region30: #{tpu_custom_call.1} parent=23 // pred_check_branch
          %440 = sbr.rel (%p438) target = $region32
        $region31: #{tpu_custom_call.1} parent=23 // pred_region
          %s441 = smul.u32 4, %s18
          %s443 = ssub.s32 1024, 1024
          %444 = vsyncadd %s434, %s443
          %s445 = smul.addr %s441, 2
          %s446 = smul.addr %s445, 128
          %s447 = scalar_lea.hbm %s1, %s446
          %s448 = sshll.u32 %s437, 4
          %s449 = int_to_ptr.vmem [resolvable:$true] %s448
          %454 = dma.vmem_to_hbm [thread:$0]  %s449, 1024, %s447, %s434, 128, 128, 8
        $region32: #{tpu_custom_call.1} parent=23 // pred_fallthru
          _
      $region24: #{tpu_custom_call.1} parent=5 // pred_fallthru
        _
      %p455 = scmp.le.s32.totalorder 2, %s13
      // Predicated region
      $region33: #{tpu_custom_call.1} parent=5 // pred_check
        %p456 = pneg %p455
      $region34: #{tpu_custom_call.1} parent=5 // pred_check_branch
        %458 = sbr.rel (%p456) target = $region36
      $region35: #{tpu_custom_call.1} parent=5 // pred_region
        %s459 = ssub.s32 %s13, 2
        // Predicated region
        $region37: #{tpu_custom_call.1} parent=35 // pred_check
          %p460 = pneg %p68
        $region38: #{tpu_custom_call.1} parent=35 // pred_check_branch
          %462 = sbr.rel (%p460) target = $region40
        $region39: #{tpu_custom_call.1} parent=35 // pred_region
          %s463 = sand.u32 %s53, 1
          %s464 = scalar_lea.sflag [#allocation5], %s463
          %s465 = sand.u32 %s53, 1
          %s466 = smul.addr %s465, 64
          %s467 = scalar_lea.vmem [#allocation6], %s466
          %468 = dma.done %s464, 1024
        $region40: #{tpu_custom_call.1} parent=35 // pred_fallthru
          _
      $region36: #{tpu_custom_call.1} parent=5 // pred_fallthru
        _
    $region6: #{tpu_custom_call.1} parent=1 // loop_footer
      %s17 = sadd.s32 1, %s13
    $region7: #{tpu_custom_call.1} parent=1 // loop_footer_branch
      %12 = sbr.rel target = $region3
    $region8: #{tpu_custom_call.1} parent=1 // loop_exit
      _
    %469 = vsyncpa [#allocation4], 1
    %s470 = scalar_lea.sflag [#allocation4], 1
    %471 = vsyncpa %s470, 1
    %472 = vsyncpa [#allocation5], 1
    %s473 = scalar_lea.sflag [#allocation5], 1
    %474 = vsyncpa %s473, 1

</llo_original>
